<compile_context>
chip_gen: v7x
topology: tpu7x:2x2x1
jax: 0.10.0
libtpu: 0.0.40
codegen_flags: <defaults>
</compile_context>

<pallas_src>
import jax
import jax.numpy as jnp
from jax.experimental import pallas as pl
from jax.experimental.pallas import tpu as pltpu


_NEG_FILL = -1e30                      # finite "-inf" for padded vocab lanes
_VMEM_BUDGET = 40 * 1024 * 1024        # live double-buffered block budget
_VMEM_LIMIT = 56 * 1024 * 1024         # < 64 MiB physical VMEM on v7x


def _round_up(x, m):
    return (x + m - 1) // m * m


def _sublane(dtype):
    # bf16/f16 pack 2 rows per sublane -> keep row tiles a multiple of 16.
    return 16 if jnp.dtype(dtype).itemsize == 2 else 8


def _choose_tile_b(B, V_pad, n_arrays, dtype):
    """Largest row tile that keeps n_arrays double-buffered blocks in budget."""
    itemsize = jnp.dtype(dtype).itemsize
    sub = _sublane(dtype)
    per_row = n_arrays * 2 * V_pad * itemsize          # 2x = double buffering
    t = (_VMEM_BUDGET // per_row) // sub * sub
    t = min(max(t, sub), 512)                          # 256-512 rows = sweet spot
    # Keep >= 2 grid blocks when the batch allows it (v7x megacore sharding).
    half = _round_up(pl.cdiv(B, 2), sub)
    t = min(t, half)
    return int(max(t, sub))


def _pad2d(x, rows, cols, fill):
    B, V = x.shape
    if rows == B and cols == V:
        return x
    return jnp.pad(x, ((0, rows - B), (0, cols - V)), constant_values=fill)


def _log_softmax_rows_f32(z):
    # numerically-stable log_softmax over the last (lane) axis, in f32
    m = jnp.max(z, axis=-1, keepdims=True)
    s = z - m
    lse = jnp.log(jnp.sum(jnp.exp(s), axis=-1, keepdims=True))
    return s - lse


def _gen_rhyme_kernel(w_ref, x_ref, f1_ref, f2_ref, o_ref):
    # w_ref: (2,) f32 in SMEM -> scalars w1, w2
    w1 = w_ref[0].astype(jnp.float32)
    w2 = w_ref[1].astype(jnp.float32)
    z = (x_ref[...].astype(jnp.float32)
         + w1 * f1_ref[...].astype(jnp.float32)
         + w2 * f2_ref[...].astype(jnp.float32))
    o_ref[...] = _log_softmax_rows_f32(z).astype(o_ref.dtype)


def _gen_plain_kernel(x_ref, o_ref):
    z = x_ref[...].astype(jnp.float32)
    o_ref[...] = _log_softmax_rows_f32(z).astype(o_ref.dtype)


@jax.jit
def _log_softmax_with_features(decoder_output, feature1, feature2, w):
    B, V = decoder_output.shape
    dtype = decoder_output.dtype
    V_pad = _round_up(V, 128)                       # lane-dense output slab
    tile_b = _choose_tile_b(B, V_pad, n_arrays=4, dtype=dtype)
    B_pad = _round_up(B, tile_b)                    # no partial row blocks

    x = _pad2d(decoder_output, B_pad, V_pad, _NEG_FILL)
    f1 = _pad2d(feature1, B_pad, V_pad, 0)
    f2 = _pad2d(feature2, B_pad, V_pad, 0)

    out = pl.pallas_call(
        _gen_rhyme_kernel,
        out_shape=jax.ShapeDtypeStruct((B_pad, V_pad), dtype),
        grid=(B_pad // tile_b,),
        in_specs=[
            pl.BlockSpec(memory_space=pltpu.SMEM),            # w = [w1, w2]
            pl.BlockSpec((tile_b, V_pad), lambda i: (i, 0)),  # decoder_output
            pl.BlockSpec((tile_b, V_pad), lambda i: (i, 0)),  # feature1
            pl.BlockSpec((tile_b, V_pad), lambda i: (i, 0)),  # feature2
        ],
        out_specs=pl.BlockSpec((tile_b, V_pad), lambda i: (i, 0)),
        compiler_params=pltpu.CompilerParams(
            dimension_semantics=("parallel",),
            vmem_limit_bytes=_VMEM_LIMIT),
    )(w, x, f1, f2)
    return out[:B, :V]


@jax.jit
def _log_softmax_plain(decoder_output):
    B, V = decoder_output.shape
    dtype = decoder_output.dtype
    V_pad = _round_up(V, 128)
    tile_b = _choose_tile_b(B, V_pad, n_arrays=2, dtype=dtype)
    B_pad = _round_up(B, tile_b)

    x = _pad2d(decoder_output, B_pad, V_pad, _NEG_FILL)

    out = pl.pallas_call(
        _gen_plain_kernel,
        out_shape=jax.ShapeDtypeStruct((B_pad, V_pad), dtype),
        grid=(B_pad // tile_b,),
        in_specs=[pl.BlockSpec((tile_b, V_pad), lambda i: (i, 0))],
        out_specs=pl.BlockSpec((tile_b, V_pad), lambda i: (i, 0)),
        compiler_params=pltpu.CompilerParams(
            dimension_semantics=("parallel",),
            vmem_limit_bytes=_VMEM_LIMIT),
    )(x)
    return out[:B, :V]


class Generator:
    """JAX/Pallas port of the PyTorch Generator module."""

    def __init__(self, rhyme_loss: bool):
        self.rhyme_loss = rhyme_loss
        # parameters as in the PyTorch __init__ (both 1.0)
        self.w1 = jnp.array([1.0], dtype=jnp.float32)
        self.w2 = jnp.array([1.0], dtype=jnp.float32)
        # packed once; avoids per-call concat/reshape on the hot path
        self._w = jnp.array([1.0, 1.0], dtype=jnp.float32)

    def forward(self, i, j, decoded_words, decoder_output, batch_size, target,
                feature1=None, feature2=None):
        # The i<4 / j<7 / rhyme_loss condition is Python-level control flow,
        # exactly as in the PyTorch module.
        if self.rhyme_loss and j < 7 and i < 4 and feature1 is not None:
            dt = decoder_output.dtype
            return _log_softmax_with_features(
                decoder_output, feature1.astype(dt), feature2.astype(dt), self._w)
        return _log_softmax_plain(decoder_output)

    __call__ = forward


if __name__ == "__main__":
    key = jax.random.PRNGKey(0)
    k1, k2, k3, k4 = jax.random.split(key, 4)

    batch_size = 8
    vocab = 256
    seq_len = 8

    decoder_output = jax.random.normal(k1, (batch_size, vocab), dtype=jnp.float32)
    # synthetic stand-ins for get_feature(...) outputs (same shape as logits)
    feature1 = jax.random.normal(k2, (batch_size, vocab), dtype=jnp.float32)
    feature2 = jax.random.normal(k3, (batch_size, vocab), dtype=jnp.float32)
    decoded_words = jax.random.randint(k4, (batch_size, seq_len), 0, vocab)
    target = decoded_words  # placeholder; only consumed by host-side get_feature

    gen = Generator(rhyme_loss=True)

    # Branch that adds rhyme features (i < 4, j < 7)
    out_rhyme = gen(i=1, j=3, decoded_words=decoded_words,
                    decoder_output=decoder_output, batch_size=batch_size,
                    target=target, feature1=feature1, feature2=feature2)
    # Branch without features
    out_plain = gen(i=5, j=7, decoded_words=decoded_words,
                    decoder_output=decoder_output, batch_size=batch_size,
                    target=target)
    jax.block_until_ready((out_rhyme, out_plain))

    ref_rhyme = jax.nn.log_softmax(
        decoder_output + 1.0 * feature1 + 1.0 * feature2, axis=1)
    ref_plain = jax.nn.log_softmax(decoder_output, axis=1)
    assert jnp.allclose(out_rhyme, ref_rhyme, atol=1e-5, rtol=1e-5)
    assert jnp.allclose(out_plain, ref_plain, atol=1e-5, rtol=1e-5)

    # Ragged shapes (exercise V->128 / B->tile padding path), f32
    kr1, kr2, kr3 = jax.random.split(k1, 3)
    x_r = jax.random.normal(kr1, (5, 250), dtype=jnp.float32)
    f1_r = jax.random.normal(kr2, (5, 250), dtype=jnp.float32)
    f2_r = jax.random.normal(kr3, (5, 250), dtype=jnp.float32)
    out_r = gen(i=0, j=0, decoded_words=None, decoder_output=x_r,
                batch_size=5, target=None, feature1=f1_r, feature2=f2_r)
    jax.block_until_ready(out_r)
    ref_r = jax.nn.log_softmax(x_r + f1_r + f2_r, axis=1)
    assert jnp.allclose(out_r, ref_r, atol=1e-5, rtol=1e-5)

    # bf16 I/O path (f32 math inside the kernel), loose tolerance for bf16 store
    x_b = jax.random.normal(k2, (16, 256), dtype=jnp.float32).astype(jnp.bfloat16)
    f1_b = feature1[:8].astype(jnp.bfloat16)
    out_b = gen(i=0, j=0, decoded_words=None,
                decoder_output=x_b[:8], batch_size=8, target=None,
                feature1=f1_b, feature2=f1_b)
    jax.block_until_ready(out_b)
    ref_b = jax.nn.log_softmax(
        x_b[:8].astype(jnp.float32) + 2.0 * f1_b.astype(jnp.float32), axis=1)
    assert jnp.allclose(out_b.astype(jnp.float32), ref_b, atol=1e-1, rtol=1e-2)

    print("KERNEL_OK")
</pallas_src>

<mosaic_0001>
module attributes {stable_mosaic.version = 11 : i64} {
  func.func @_gen_rhyme_kernel(%arg0: i32, %arg1: memref<2xf32, #tpu.memory_space<smem>>, %arg2: memref<8x256xf32, #tpu.memory_space<vmem>>, %arg3: memref<8x256xf32, #tpu.memory_space<vmem>>, %arg4: memref<8x256xf32, #tpu.memory_space<vmem>>, %arg5: memref<8x256xf32, #tpu.memory_space<vmem>>) attributes {dimension_semantics = [#tpu.dimension_semantics<parallel>], iteration_bounds = array<i64: 1>, scalar_prefetch = 0 : i64, scratch_operands = 0 : i64, tpu.core_type = #tpu.core_type<tc>, window_params = [{transform_indices = @transform_0, window_bounds = array<i64: 2>}, {transform_indices = @transform_1, window_bounds = array<i64: 8, 256>}, {transform_indices = @transform_2, window_bounds = array<i64: 8, 256>}, {transform_indices = @transform_3, window_bounds = array<i64: 8, 256>}, {transform_indices = @transform_4, window_bounds = array<i64: 8, 256>}]} {
    %c0 = arith.constant 0 : index
    %0 = memref.load %arg1[%c0] : memref<2xf32, #tpu.memory_space<smem>>
    %c1 = arith.constant 1 : index
    %1 = memref.load %arg1[%c1] : memref<2xf32, #tpu.memory_space<smem>>
    %c0_0 = arith.constant 0 : index
    %c0_1 = arith.constant 0 : index
    %2 = vector.load %arg2[%c0_0, %c0_1] : memref<8x256xf32, #tpu.memory_space<vmem>>, vector<8x256xf32>
    %c0_2 = arith.constant 0 : index
    %c0_3 = arith.constant 0 : index
    %3 = vector.load %arg3[%c0_2, %c0_3] : memref<8x256xf32, #tpu.memory_space<vmem>>, vector<8x256xf32>
    %4 = vector.broadcast %0 : f32 to vector<8x256xf32>
    %5 = arith.mulf %4, %3 : vector<8x256xf32>
    %6 = arith.addf %2, %5 : vector<8x256xf32>
    %c0_4 = arith.constant 0 : index
    %c0_5 = arith.constant 0 : index
    %7 = vector.load %arg4[%c0_4, %c0_5] : memref<8x256xf32, #tpu.memory_space<vmem>>, vector<8x256xf32>
    %8 = vector.broadcast %1 : f32 to vector<8x256xf32>
    %9 = arith.mulf %8, %7 : vector<8x256xf32>
    %10 = arith.addf %6, %9 : vector<8x256xf32>
    %cst = arith.constant dense<0xFF800000> : vector<8xf32>
    %11 = vector.multi_reduction <maximumf>, %10, %cst [1] : vector<8x256xf32> to vector<8xf32>
    %12 = vector.shape_cast %11 : vector<8xf32> to vector<8x1xf32>
    %13 = vector.broadcast %12 : vector<8x1xf32> to vector<8x256xf32>
    %14 = arith.subf %10, %13 : vector<8x256xf32>
    %15 = math.exp %14 : vector<8x256xf32>
    %cst_6 = arith.constant dense<0.000000e+00> : vector<8xf32>
    %16 = vector.multi_reduction <add>, %15, %cst_6 [1] : vector<8x256xf32> to vector<8xf32>
    %17 = vector.shape_cast %16 : vector<8xf32> to vector<8x1xf32>
    %18 = math.log %17 : vector<8x1xf32>
    %19 = vector.broadcast %18 : vector<8x1xf32> to vector<8x256xf32>
    %20 = arith.subf %14, %19 : vector<8x256xf32>
    %c0_7 = arith.constant 0 : index
    %c0_8 = arith.constant 0 : index
    %21 = vector.load %arg5[%c0_7, %c0_8] : memref<8x256xf32, #tpu.memory_space<vmem>>, vector<8x256xf32>
    tpu.vector_store %arg5[%c0_7, %c0_8], %20 {strides = array<i32>} : memref<8x256xf32, #tpu.memory_space<vmem>>, vector<8x256xf32>,
    return
  }
  func.func @transform_0(%arg0: i32) -> i32 {
    %c0_i32 = arith.constant 0 : i32
    %c0_i32_0 = arith.constant 0 : i32
    return %c0_i32 : i32
  }
  func.func @transform_1(%arg0: i32) -> (i32, i32) {
    %c0_i32 = arith.constant 0 : i32
    %c0_i32_0 = arith.constant 0 : i32
    return %arg0, %c0_i32 : i32, i32
  }
  func.func @transform_2(%arg0: i32) -> (i32, i32) {
    %c0_i32 = arith.constant 0 : i32
    %c0_i32_0 = arith.constant 0 : i32
    return %arg0, %c0_i32 : i32, i32
  }
  func.func @transform_3(%arg0: i32) -> (i32, i32) {
    %c0_i32 = arith.constant 0 : i32
    %c0_i32_0 = arith.constant 0 : i32
    return %arg0, %c0_i32 : i32, i32
  }
  func.func @transform_4(%arg0: i32) -> (i32, i32) {
    %c0_i32 = arith.constant 0 : i32
    %c0_i32_0 = arith.constant 0 : i32
    return %arg0, %c0_i32 : i32, i32
  }
}

</mosaic_0001>

<llo_original>
// kernel: _log_softmax_with_features.1
$region0: #{_log_softmax_with_features.1}
  #allocation0 [shape = 'u32[]', space=smem, size = 0x4, offset = 0x4, fixed_abs, tag = 'smem constant byte address 0x4 - core index']
  #allocation1 [shape = 'u32[144,128]{1,0:T(1,128)}', space=vmem, size = 0x12000, scoped, tag = 'internal scratch']
  %s0 = inlined_call_operand.vmem [shape: f32[2], index: 0, kind: input, shape index: {}]
  %s1 = inlined_call_operand.hbm [shape: f32[8,256], index: 1, kind: input, shape index: {}]
  %s2 = inlined_call_operand.hbm [shape: f32[8,256], index: 2, kind: input, shape index: {}]
  %s3 = inlined_call_operand.hbm [shape: f32[8,256], index: 3, kind: input, shape index: {}]
  %s4 = inlined_call_operand.hbm [shape: f32[8,256], index: 4, kind: output, shape index: {}]
  %s5 = sld [smem:[#allocation0]]
  $region42: #{_log_softmax_with_features.1} parent=0
    _
  %s7 = ssub.s32 1, %s5
  %s8 = scalar_select 0, %s7, %s5
  $region1: #{_log_softmax_with_features.1} parent=0
    #allocation2 [shape = 'u8[512]{0}', space=smem, size = 0x200, scoped, tag = 'input window, operand 0, single buffered']
    #allocation3 [shape = 's32[1]{0}', space=sflag, size = 0x4, scoped, tag = 'scoped memory for _log_softmax_with_features.1']
    #allocation4 [shape = 's32[1]{0}', space=sflag, size = 0x4, scoped, tag = 'scoped memory for _log_softmax_with_features.1']
    #allocation5 [shape = 's32[1]{0}', space=sflag, size = 0x4, scoped, tag = 'scoped memory for _log_softmax_with_features.1']
    #allocation6 [shape = 'u8[8192]{0}', space=vmem, size = 0x2000, scoped, tag = 'input window, operand 1, single buffered']
    #allocation7 [shape = 'u8[8192]{0}', space=vmem, size = 0x2000, scoped, tag = 'input window, operand 2, single buffered']
    #allocation8 [shape = 's32[1]{0}', space=sflag, size = 0x4, scoped, tag = 'scoped memory for _log_softmax_with_features.1']
    #allocation9 [shape = 'u8[8192]{0}', space=vmem, size = 0x2000, scoped, tag = 'input window, operand 3, single buffered']
    #allocation10 [shape = 'u8[8192]{0}', space=vmem, size = 0x2000, scoped, tag = 'output window, operand 0, single buffered']
    %9 = vsyncpa [#allocation5], 0
    %10 = vsyncpa [#allocation3], 0
    %11 = vsyncpa [#allocation8], 0
    %12 = vsyncpa [#allocation4], 0
    // Predicated region
    $region2: #{_log_softmax_with_features.1} parent=1 // pred_check
      _
    $region3: #{_log_softmax_with_features.1} parent=1 // pred_check_branch
      %14 = sbr.rel (0) target = $region5
    $region4: #{_log_softmax_with_features.1} parent=1 // pred_region
      %s16 = ssub.s32 16, 16
      %17 = vsyncadd [#allocation5], %s16
      %s19 = sshll.u32 %s0, 4
      %s20 = int_to_ptr.vmem [resolvable:$true] %s19
      %22 = dma.vmem_to_smem %s20, 16, [#allocation2], [#allocation5]
    $region5: #{_log_softmax_with_features.1} parent=1 // pred_fallthru
      _
    // Predicated region
    $region6: #{_log_softmax_with_features.1} parent=1 // pred_check
      _
    $region7: #{_log_softmax_with_features.1} parent=1 // pred_check_branch
      %24 = sbr.rel (0) target = $region9
    $region8: #{_log_softmax_with_features.1} parent=1 // pred_region
      %s26 = ssub.s32 256, 256
      %27 = vsyncadd [#allocation3], %s26
      %s29 = sshll.u32 [#allocation6], 4
      %s30 = int_to_ptr.vmem [resolvable:$true] %s29
      %32 = dma.hbm_to_vmem [thread:$0]  %s1, 256, %s30, [#allocation3]
    $region9: #{_log_softmax_with_features.1} parent=1 // pred_fallthru
      _
    // Predicated region
    $region10: #{_log_softmax_with_features.1} parent=1 // pred_check
      _
    $region11: #{_log_softmax_with_features.1} parent=1 // pred_check_branch
      %34 = sbr.rel (0) target = $region13
    $region12: #{_log_softmax_with_features.1} parent=1 // pred_region
      %s36 = ssub.s32 256, 256
      %37 = vsyncadd [#allocation8], %s36
      %s39 = sshll.u32 [#allocation7], 4
      %s40 = int_to_ptr.vmem [resolvable:$true] %s39
      %42 = dma.hbm_to_vmem [thread:$0]  %s2, 256, %s40, [#allocation8]
    $region13: #{_log_softmax_with_features.1} parent=1 // pred_fallthru
      _
    // Predicated region
    $region14: #{_log_softmax_with_features.1} parent=1 // pred_check
      _
    $region15: #{_log_softmax_with_features.1} parent=1 // pred_check_branch
      %44 = sbr.rel (0) target = $region17
    $region16: #{_log_softmax_with_features.1} parent=1 // pred_region
      %s46 = ssub.s32 256, 256
      %47 = vsyncadd [#allocation8], %s46
      %s49 = sshll.u32 [#allocation9], 4
      %s50 = int_to_ptr.vmem [resolvable:$true] %s49
      %52 = dma.hbm_to_vmem [thread:$0]  %s3, 256, %s50, [#allocation8]
    $region17: #{_log_softmax_with_features.1} parent=1 // pred_fallthru
      _
    // Predicated region
    $region18: #{_log_softmax_with_features.1} parent=1 // pred_check
      _
    $region19: #{_log_softmax_with_features.1} parent=1 // pred_check_branch
      %54 = sbr.rel (0) target = $region21
    $region20: #{_log_softmax_with_features.1} parent=1 // pred_region
      %55 = dma.done [#allocation5], 16
    $region21: #{_log_softmax_with_features.1} parent=1 // pred_fallthru
      _
    // Predicated region
    $region22: #{_log_softmax_with_features.1} parent=1 // pred_check
      _
    $region23: #{_log_softmax_with_features.1} parent=1 // pred_check_branch
      %57 = sbr.rel (0) target = $region25
    $region24: #{_log_softmax_with_features.1} parent=1 // pred_region
      %58 = dma.done [#allocation3], 256
    $region25: #{_log_softmax_with_features.1} parent=1 // pred_fallthru
      _
    // Predicated region
    $region26: #{_log_softmax_with_features.1} parent=1 // pred_check
      _
    $region27: #{_log_softmax_with_features.1} parent=1 // pred_check_branch
      %60 = sbr.rel (0) target = $region29
    $region28: #{_log_softmax_with_features.1} parent=1 // pred_region
      %61 = dma.done [#allocation8], 256
    $region29: #{_log_softmax_with_features.1} parent=1 // pred_fallthru
      _
    // Predicated region
    $region30: #{_log_softmax_with_features.1} parent=1 // pred_check
      _
    $region31: #{_log_softmax_with_features.1} parent=1 // pred_check_branch
      %63 = sbr.rel (0) target = $region33
    $region32: #{_log_softmax_with_features.1} parent=1 // pred_region
      %64 = dma.done [#allocation8], 256
    $region33: #{_log_softmax_with_features.1} parent=1 // pred_fallthru
      _
    %65 = sfence
    %s66 = sld [smem:[#allocation2]]
    %s67 = sld [smem:[#allocation2 + $0x1]]
    %v68 = vld [vmem:[#allocation6] sm:$0xff]
    %v69 = vld [vmem:[#allocation6 + $0x8] sm:$0xff]
    %v70 = vld [vmem:[#allocation7] sm:$0xff]
    %v71 = vld [vmem:[#allocation7 + $0x8] sm:$0xff]
    %v72 = vstv %s66
    %v73 = vmul.f32 %v72, %v70
    %v74 = vmul.f32 %v72, %v71
    %v75 = vadd.f32 %v68, %v73
    %v76 = vadd.f32 %v69, %v74
    %v77 = vld [vmem:[#allocation9] sm:$0xff]
    %v78 = vld [vmem:[#allocation9 + $0x8] sm:$0xff]
    %v79 = vstv %s67
    %v80 = vmul.f32 %v79, %v77
    %v81 = vmul.f32 %v79, %v78
    %v82 = vadd.f32 %v75, %v80
    %v83 = vadd.f32 %v76, %v81
    %v84 = vmax.f32 %v82, %v83
    %85 = vmax.xlane.f32.xlu0 %v84
    %v86 = vpop.xlane.xlu0 %85
    %v87 = vsub.f32 %v82, %v86
    %v88 = vsub.f32 %v83, %v86
    %v89 = vmul.f32 %v87, 1.442695
    %v90 = vpow.pop %v89
    %v91 = vmul.f32 %v88, 1.442695
    %v92 = vpow.pop %v91
    %v93 = vadd.f32 %v90, %v92
    %94 = vadd.xlane.f32.xlu0 %v93
    %v95 = vpop.xlane.xlu0 %94
    %v96 = vlog2.pop %v95
    %v97 = vmul.f32 %v96, 0.6931472
    %v98 = vsub.f32 %v87, %v97
    %v99 = vsub.f32 %v88, %v97
    %100 = vst [vmem:[#allocation10] sm:$0xff] %v98
    %101 = vst [vmem:[#allocation10 + $0x8] sm:$0xff] %v99
    // Predicated region
    $region34: #{_log_softmax_with_features.1} parent=1 // pred_check
      _
    $region35: #{_log_softmax_with_features.1} parent=1 // pred_check_branch
      %103 = sbr.rel (0) target = $region37
    $region36: #{_log_softmax_with_features.1} parent=1 // pred_region
      %s105 = ssub.s32 256, 256
      %106 = vsyncadd [#allocation4], %s105
      %s108 = sshll.u32 [#allocation10], 4
      %s109 = int_to_ptr.vmem [resolvable:$true] %s108
      %111 = dma.vmem_to_hbm [thread:$0]  %s109, 256, %s4, [#allocation4]
    $region37: #{_log_softmax_with_features.1} parent=1 // pred_fallthru
      _
    // Predicated region
    $region38: #{_log_softmax_with_features.1} parent=1 // pred_check
      _
    $region39: #{_log_softmax_with_features.1} parent=1 // pred_check_branch
      %113 = sbr.rel (0) target = $region41
    $region40: #{_log_softmax_with_features.1} parent=1 // pred_region
      %114 = dma.done [#allocation4], 256
    $region41: #{_log_softmax_with_features.1} parent=1 // pred_fallthru
      _
    %115 = vsyncpa [#allocation3], 1
    %116 = vsyncpa [#allocation8], 1
    %117 = vsyncpa [#allocation4], 1
    %118 = vsyncpa [#allocation5], 1

</llo_original>
